<compile_context>
chip_gen: v7x
topology: tpu7x:2x2x1
jax: 0.10.0
libtpu: 0.0.40
codegen_flags: <defaults>
</compile_context>

<pallas_src>
import functools

import jax
import jax.numpy as jnp
import numpy as np
from jax.experimental import pallas as pl
from jax.experimental.pallas import tpu as pltpu

# ----------------------------- configuration -------------------------------
DIM = 32        # model dim
DIM_HEAD = 16   # per-head dim
HEADS = 4
BATCH = 2
SEQ = 8
LN_EPS = 1e-5                    # torch.nn.LayerNorm default
SCALE = DIM_HEAD ** (-0.5)       # 0.25 -> exact power of two, applied in-kernel
NEG_INF = -1e30                  # mask value for invalid key columns
KV_PAD = 8                       # extra key rows: 1 null_kv row + 7 zero rows


def _layernorm(x, gamma, beta):
    # x: (rows, dim); gamma/beta: (1, dim). Matches torch LayerNorm (biased var).
    mean = jnp.mean(x, axis=-1, keepdims=True)
    var = jnp.mean((x - mean) ** 2, axis=-1, keepdims=True)
    return (x - mean) * jax.lax.rsqrt(var + LN_EPS) * gamma + beta


def _floordiv(x, d: int):
    # Vector int div by a static constant (bit-shift when power of two).
    if d & (d - 1) == 0:
        return x >> (d.bit_length() - 1)
    return x // d


def _mod(x, d: int):
    if d & (d - 1) == 0:
        return x & (d - 1)
    return x % d


def _attention_kernel(x_ref, wqkv_ref, nk_tail_ref, nv_tail_ref, wout_ref,
                      ln1_g_ref, ln1_b_ref, ln2_g_ref, ln2_b_ref,
                      o_ref, *, heads, dim_head, seq, batch_block):
    bbn = batch_block * seq             # rows handled this step
    hd = heads * dim_head

    # ---- input LayerNorm (f32, VPU) ----
    xn = _layernorm(x_ref[...], ln1_g_ref[...], ln1_b_ref[...])      # (bbn, dim)

    # ---- fused Q/K/V projection: ONE MXU matmul, bf16 operands, f32 acc ----
    qkv = jnp.dot(xn.astype(jnp.bfloat16), wqkv_ref[...],
                  preferred_element_type=jnp.float32)                # (bbn, hd+2Dh)

    # ---- head-major queries in-register: rows ordered (head, batch, seq) ----
    q = jnp.concatenate(
        [qkv[:, h * dim_head:(h + 1) * dim_head] for h in range(heads)],
        axis=0)                                                      # (H*bbn, Dh)

    # ---- padded K/V in-register: real keys, then the host-prepared tail
    #      (null_kv row at index bbn, then zero pad rows). Torch prepends the
    #      null key; softmax is permutation-invariant over keys so appending is
    #      equivalent as long as K and V rows stay paired. ----
    k = jnp.concatenate([qkv[:, hd:hd + dim_head], nk_tail_ref[...]], axis=0)
    v = jnp.concatenate([qkv[:, hd + dim_head:hd + 2 * dim_head],
                         nv_tail_ref[...]], axis=0)                  # (kv_tot, Dh)

    # ---- ONE score matmul for all heads / batch rows (no K transpose) ----
    s = jax.lax.dot_general(q.astype(jnp.bfloat16), k.astype(jnp.bfloat16),
                            (((1,), (1,)), ((), ())),
                            preferred_element_type=jnp.float32)      # (H*bbn, kv_tot)
    s = s * SCALE      # exact (power of two); applied here, not in the wrapper

    # ---- mask generated in-kernel (no DMA'd dense bias): valid keys are the
    #      query's own batch plus the shared null key at column bbn ----
    r = jax.lax.broadcasted_iota(jnp.int32, s.shape, 0)
    c = jax.lax.broadcasted_iota(jnp.int32, s.shape, 1)
    row_b = _mod(_floordiv(r, seq), batch_block)    # query's batch index
    col_b = _floordiv(c, seq)                       # key's batch index (c < bbn)
    valid = (c == bbn) | ((c < bbn) & (col_b == row_b))
    s = jnp.where(valid, s, jnp.float32(NEG_INF))

    # ---- single f32 softmax; normalization via approx EUP reciprocal ----
    m = jnp.max(s, axis=-1, keepdims=True)
    e = jnp.exp(s - m)
    denom = jnp.sum(e, axis=-1, keepdims=True)
    p = e * pl.reciprocal(denom, approx=True)

    # ---- ONE probs @ V matmul for all heads ----
    att = jnp.dot(p.astype(jnp.bfloat16), v.astype(jnp.bfloat16),
                  preferred_element_type=jnp.float32)                # (H*bbn, Dh)

    # ---- regroup heads onto the lane axis in-register: (bbn, H*Dh) ----
    att_re = jnp.concatenate(
        [att[h * bbn:(h + 1) * bbn, :] for h in range(heads)], axis=1)

    # ---- output projection + LayerNorm ----
    out = jnp.dot(att_re.astype(jnp.bfloat16), wout_ref[...],
                  preferred_element_type=jnp.float32)                # (bbn, dim)
    # TODO(synk): lane-dense output reshape ((bbn*dim)//128, 128) once dim/seq
    # grow enough for masked 32-of-128 stores to matter.
    o_ref[...] = _layernorm(out, ln2_g_ref[...], ln2_b_ref[...])


def prepare_params(params):
    """One-time (outside jit) packing of the torch-equivalent parameters.

    No per-call wrapper ops: fused Wqkv, bf16 weight casts and the null-kv /
    zero-pad K/V tail are all built once here.
    """
    wq, wkv, null_kv, wout, ln1_g, ln1_b, ln2_g, ln2_b = params
    w_qkv = jnp.concatenate([wq, wkv], axis=1).astype(jnp.bfloat16)  # (dim, hd+2Dh)
    zeros = jnp.zeros((KV_PAD - 1, DIM_HEAD), jnp.float32)
    nk_tail = jnp.concatenate([null_kv[0:1, :], zeros], axis=0)      # (KV_PAD, Dh)
    nv_tail = jnp.concatenate([null_kv[1:2, :], zeros], axis=0)
    return (w_qkv, nk_tail, nv_tail, wout.astype(jnp.bfloat16),
            ln1_g, ln1_b, ln2_g, ln2_b)


@jax.jit
def attention_types_normal(x, prepared):
    """x: (B, N, dim) float32 -> (B, N, dim) float32."""
    b, n, dim = x.shape
    w_qkv, nk_tail, nv_tail, wout_bf, ln1_g, ln1_b, ln2_g, ln2_b = prepared
    hd = HEADS * DIM_HEAD
    bbn = b * n
    assert bbn % 8 == 0, "b*n must be a multiple of 8"  # TODO(synk): ragged seq

    # Whole batch in ONE grid step on every chip generation: at this size the
    # kernel is latency-bound, so splitting across TensorCores only duplicates
    # weight DMAs and adds per-step overhead.
    kernel = functools.partial(_attention_kernel, heads=HEADS,
                               dim_head=DIM_HEAD, seq=n, batch_block=b)

    x2d = x.reshape(bbn, dim)          # metadata-only reshape

    def full(shape):
        return pl.BlockSpec(shape, lambda i: (0,) * len(shape))

    out2d = pl.pallas_call(
        kernel,
        out_shape=jax.ShapeDtypeStruct((bbn, dim), jnp.float32),
        grid=(1,),
        in_specs=[
            full((bbn, dim)),                  # x rows
            full((dim, hd + 2 * DIM_HEAD)),    # fused Wqkv (bf16)
            full((KV_PAD, DIM_HEAD)),          # K tail: null key + zero pad
            full((KV_PAD, DIM_HEAD)),          # V tail: null value + zero pad
            full((hd, dim)),                   # Wout (bf16)
            full((1, dim)), full((1, dim)),    # LN1 gamma/beta
            full((1, dim)), full((1, dim)),    # LN2 gamma/beta
        ],
        out_specs=full((bbn, dim)),
        compiler_params=pltpu.CompilerParams(
            dimension_semantics=("arbitrary",)),
    )(x2d, w_qkv, nk_tail, nv_tail, wout_bf, ln1_g, ln1_b, ln2_g, ln2_b)

    return out2d.reshape(b, n, dim)


def _reference(x, params):
    """Plain-JAX replica of the PyTorch forward (att_type='normal'), f32."""
    wq, wkv, null_kv, wout, ln1_g, ln1_b, ln2_g, ln2_b = params
    b, n, dim = x.shape

    def ln(t, g, bta):
        m = jnp.mean(t, axis=-1, keepdims=True)
        v = jnp.mean((t - m) ** 2, axis=-1, keepdims=True)
        return (t - m) / jnp.sqrt(v + LN_EPS) * g + bta

    xn = ln(x, ln1_g, ln1_b)
    q = xn @ wq                                               # (b, n, H*Dh)
    q = q.reshape(b, n, HEADS, DIM_HEAD).transpose(0, 2, 1, 3) * SCALE
    kv = xn @ wkv
    k, v = kv[..., :DIM_HEAD], kv[..., DIM_HEAD:]
    nk = jnp.broadcast_to(null_kv[0][None, None, :], (b, 1, DIM_HEAD))
    nv = jnp.broadcast_to(null_kv[1][None, None, :], (b, 1, DIM_HEAD))
    k = jnp.concatenate([nk, k], axis=1)
    v = jnp.concatenate([nv, v], axis=1)
    score = jnp.einsum('bhid,bjd->bhij', q, k)
    probs = jax.nn.softmax(score.astype(jnp.float32), axis=-1)
    att = jnp.einsum('bhij,bjd->bhid', probs, v)
    att = att.transpose(0, 2, 1, 3).reshape(b, n, HEADS * DIM_HEAD)
    out = att @ wout
    return ln(out, ln2_g, ln2_b)


def _init_params(key):
    ks = jax.random.split(key, 4)
    hd = HEADS * DIM_HEAD
    wq = jax.random.normal(ks[0], (DIM, hd), jnp.float32) * (DIM ** -0.5)
    wkv = jax.random.normal(ks[1], (DIM, 2 * DIM_HEAD), jnp.float32) * (DIM ** -0.5)
    null_kv = jax.random.normal(ks[2], (2, DIM_HEAD), jnp.float32)
    wout = jax.random.normal(ks[3], (hd, DIM), jnp.float32) * (hd ** -0.5)
    ln1_g = jnp.ones((1, DIM), jnp.float32)
    ln1_b = jnp.zeros((1, DIM), jnp.float32)
    ln2_g = jnp.ones((1, DIM), jnp.float32)
    ln2_b = jnp.zeros((1, DIM), jnp.float32)
    return (wq, wkv, null_kv, wout, ln1_g, ln1_b, ln2_g, ln2_b)


if __name__ == "__main__":
    key = jax.random.PRNGKey(0)
    kx, kp = jax.random.split(key)
    x = jax.random.normal(kx, (BATCH, SEQ, DIM), jnp.float32)
    params = _init_params(kp)
    prepared = prepare_params(params)   # once, outside the jitted call

    out = jax.block_until_ready(attention_types_normal(x, prepared))
    ref = _reference(x, params)

    # Error budget: bf16 MXU operands on four chained matmuls + bf16 weight
    # storage + the approx EUP reciprocal.  Structural bugs (mask, head
    # mapping, null-kv pairing) produce O(1) errors, so this tolerance still
    # validates correctness against the f32 torch-equivalent reference.
    np.testing.assert_allclose(np.asarray(out), np.asarray(ref),
                               rtol=2e-2, atol=5e-2)
    print("KERNEL_OK")
</pallas_src>

<mosaic_0001>
module attributes {stable_mosaic.version = 11 : i64} {
  func.func @_attention_kernel(%arg0: i32, %arg1: memref<16x32xf32, #tpu.memory_space<vmem>>, %arg2: memref<32x96xbf16, #tpu.memory_space<vmem>>, %arg3: memref<8x16xf32, #tpu.memory_space<vmem>>, %arg4: memref<8x16xf32, #tpu.memory_space<vmem>>, %arg5: memref<64x32xbf16, #tpu.memory_space<vmem>>, %arg6: memref<1x32xf32, #tpu.memory_space<vmem>>, %arg7: memref<1x32xf32, #tpu.memory_space<vmem>>, %arg8: memref<1x32xf32, #tpu.memory_space<vmem>>, %arg9: memref<1x32xf32, #tpu.memory_space<vmem>>, %arg10: memref<16x32xf32, #tpu.memory_space<vmem>>) attributes {dimension_semantics = [#tpu.dimension_semantics<arbitrary>], iteration_bounds = array<i64: 1>, scalar_prefetch = 0 : i64, scratch_operands = 0 : i64, tpu.core_type = #tpu.core_type<tc>, window_params = [{pipeline_mode = #tpu.pipeline_mode<synchronous>, transform_indices = @transform_0, window_bounds = array<i64: 16, 32>}, {pipeline_mode = #tpu.pipeline_mode<synchronous>, transform_indices = @transform_1, window_bounds = array<i64: 32, 96>}, {pipeline_mode = #tpu.pipeline_mode<synchronous>, transform_indices = @transform_2, window_bounds = array<i64: 8, 16>}, {pipeline_mode = #tpu.pipeline_mode<synchronous>, transform_indices = @transform_3, window_bounds = array<i64: 8, 16>}, {pipeline_mode = #tpu.pipeline_mode<synchronous>, transform_indices = @transform_4, window_bounds = array<i64: 64, 32>}, {pipeline_mode = #tpu.pipeline_mode<synchronous>, transform_indices = @transform_5, window_bounds = array<i64: 1, 32>}, {pipeline_mode = #tpu.pipeline_mode<synchronous>, transform_indices = @transform_6, window_bounds = array<i64: 1, 32>}, {pipeline_mode = #tpu.pipeline_mode<synchronous>, transform_indices = @transform_7, window_bounds = array<i64: 1, 32>}, {pipeline_mode = #tpu.pipeline_mode<synchronous>, transform_indices = @transform_8, window_bounds = array<i64: 1, 32>}, {pipeline_mode = #tpu.pipeline_mode<synchronous>, transform_indices = @transform_9, window_bounds = array<i64: 16, 32>}]} {
    %c0 = arith.constant 0 : index
    %c0_0 = arith.constant 0 : index
    %0 = vector.load %arg1[%c0, %c0_0] : memref<16x32xf32, #tpu.memory_space<vmem>>, vector<16x32xf32>
    %c0_1 = arith.constant 0 : index
    %c0_2 = arith.constant 0 : index
    %1 = vector.load %arg6[%c0_1, %c0_2] : memref<1x32xf32, #tpu.memory_space<vmem>>, vector<1x32xf32>
    %c0_3 = arith.constant 0 : index
    %c0_4 = arith.constant 0 : index
    %2 = vector.load %arg7[%c0_3, %c0_4] : memref<1x32xf32, #tpu.memory_space<vmem>>, vector<1x32xf32>
    %cst = arith.constant dense<0.000000e+00> : vector<16xf32>
    %3 = vector.multi_reduction <add>, %0, %cst [1] : vector<16x32xf32> to vector<16xf32>
    %4 = vector.shape_cast %3 : vector<16xf32> to vector<16x1xf32>
    %cst_5 = arith.constant 3.200000e+01 : f32
    %5 = vector.broadcast %cst_5 : f32 to vector<16x1xf32>
    %6 = arith.divf %4, %5 : vector<16x1xf32>
    %7 = vector.broadcast %6 : vector<16x1xf32> to vector<16x32xf32>
    %8 = arith.subf %0, %7 : vector<16x32xf32>
    %9 = arith.mulf %8, %8 : vector<16x32xf32>
    %cst_6 = arith.constant dense<0.000000e+00> : vector<16xf32>
    %10 = vector.multi_reduction <add>, %9, %cst_6 [1] : vector<16x32xf32> to vector<16xf32>
    %11 = vector.shape_cast %10 : vector<16xf32> to vector<16x1xf32>
    %cst_7 = arith.constant 3.200000e+01 : f32
    %12 = vector.broadcast %cst_7 : f32 to vector<16x1xf32>
    %13 = arith.divf %11, %12 : vector<16x1xf32>
    %14 = vector.broadcast %6 : vector<16x1xf32> to vector<16x32xf32>
    %15 = arith.subf %0, %14 : vector<16x32xf32>
    %cst_8 = arith.constant 9.99999974E-6 : f32
    %16 = vector.broadcast %cst_8 : f32 to vector<16x1xf32>
    %17 = arith.addf %13, %16 : vector<16x1xf32>
    %18 = math.rsqrt %17 : vector<16x1xf32>
    %19 = vector.broadcast %18 : vector<16x1xf32> to vector<16x32xf32>
    %20 = arith.mulf %15, %19 : vector<16x32xf32>
    %21 = vector.broadcast %1 : vector<1x32xf32> to vector<16x32xf32>
    %22 = arith.mulf %20, %21 : vector<16x32xf32>
    %23 = vector.broadcast %2 : vector<1x32xf32> to vector<16x32xf32>
    %24 = arith.addf %22, %23 : vector<16x32xf32>
    %25 = arith.truncf %24 : vector<16x32xf32> to vector<16x32xbf16>
    %c0_9 = arith.constant 0 : index
    %c0_10 = arith.constant 0 : index
    %26 = vector.load %arg2[%c0_9, %c0_10] : memref<32x96xbf16, #tpu.memory_space<vmem>>, vector<32x96xbf16>
    %cst_11 = arith.constant dense<0.000000e+00> : vector<16x96xf32>
    %27 = tpu.matmul %25, %26, %cst_11 {dimension_numbers = #tpu.dot_dimension_numbers<[1], [0], [0], [1], [0, 0, 1, 1], [], []>} : vector<16x32xbf16>, vector<32x96xbf16>, vector<16x96xf32> -> vector<16x96xf32>
    %28 = vector.extract_strided_slice %27 {offsets = [0, 0], sizes = [16, 16], strides = [1, 1]} : vector<16x96xf32> to vector<16x16xf32>
    %29 = vector.extract_strided_slice %27 {offsets = [0, 16], sizes = [16, 16], strides = [1, 1]} : vector<16x96xf32> to vector<16x16xf32>
    %30 = vector.extract_strided_slice %27 {offsets = [0, 32], sizes = [16, 16], strides = [1, 1]} : vector<16x96xf32> to vector<16x16xf32>
    %31 = vector.extract_strided_slice %27 {offsets = [0, 48], sizes = [16, 16], strides = [1, 1]} : vector<16x96xf32> to vector<16x16xf32>
    %32 = tpu.concatenate %28, %29, %30, %31 in 0 : vector<16x16xf32>, vector<16x16xf32>, vector<16x16xf32>, vector<16x16xf32> -> vector<64x16xf32>
    %33 = vector.extract_strided_slice %27 {offsets = [0, 64], sizes = [16, 16], strides = [1, 1]} : vector<16x96xf32> to vector<16x16xf32>
    %c0_12 = arith.constant 0 : index
    %c0_13 = arith.constant 0 : index
    %34 = vector.load %arg3[%c0_12, %c0_13] : memref<8x16xf32, #tpu.memory_space<vmem>>, vector<8x16xf32>
    %35 = tpu.concatenate %33, %34 in 0 : vector<16x16xf32>, vector<8x16xf32> -> vector<24x16xf32>
    %36 = vector.extract_strided_slice %27 {offsets = [0, 80], sizes = [16, 16], strides = [1, 1]} : vector<16x96xf32> to vector<16x16xf32>
    %c0_14 = arith.constant 0 : index
    %c0_15 = arith.constant 0 : index
    %37 = vector.load %arg4[%c0_14, %c0_15] : memref<8x16xf32, #tpu.memory_space<vmem>>, vector<8x16xf32>
    %38 = tpu.concatenate %36, %37 in 0 : vector<16x16xf32>, vector<8x16xf32> -> vector<24x16xf32>
    %39 = arith.truncf %32 : vector<64x16xf32> to vector<64x16xbf16>
    %40 = arith.truncf %35 : vector<24x16xf32> to vector<24x16xbf16>
    %cst_16 = arith.constant dense<0.000000e+00> : vector<64x24xf32>
    %41 = tpu.matmul %39, %40, %cst_16 {dimension_numbers = #tpu.dot_dimension_numbers<[1], [1], [0], [0], [0, 0, 1, 0], [], []>} : vector<64x16xbf16>, vector<24x16xbf16>, vector<64x24xf32> -> vector<64x24xf32>
    %cst_17 = arith.constant 2.500000e-01 : f32
    %42 = vector.broadcast %cst_17 : f32 to vector<64x24xf32>
    %43 = arith.mulf %41, %42 : vector<64x24xf32>
    %44 = tpu.iota {dimensions = array<i32: 0>} : vector<64x24xi32>
    %45 = tpu.iota {dimensions = array<i32: 1>} : vector<64x24xi32>
    %c3_i32 = arith.constant 3 : i32
    %46 = vector.broadcast %c3_i32 : i32 to vector<64x24xi32>
    %47 = arith.shrsi %44, %46 : vector<64x24xi32>
    %c1_i32 = arith.constant 1 : i32
    %48 = vector.broadcast %c1_i32 : i32 to vector<64x24xi32>
    %49 = arith.andi %47, %48 : vector<64x24xi32>
    %c3_i32_18 = arith.constant 3 : i32
    %50 = vector.broadcast %c3_i32_18 : i32 to vector<64x24xi32>
    %51 = arith.shrsi %45, %50 : vector<64x24xi32>
    %c16_i32 = arith.constant 16 : i32
    %52 = vector.broadcast %c16_i32 : i32 to vector<64x24xi32>
    %53 = arith.cmpi eq, %45, %52 : vector<64x24xi32>
    %c16_i32_19 = arith.constant 16 : i32
    %54 = vector.broadcast %c16_i32_19 : i32 to vector<64x24xi32>
    %55 = arith.cmpi slt, %45, %54 : vector<64x24xi32>
    %56 = arith.cmpi eq, %51, %49 : vector<64x24xi32>
    %57 = arith.andi %55, %56 : vector<64x24xi1>
    %58 = arith.ori %53, %57 : vector<64x24xi1>
    %cst_20 = arith.constant -1.000000e+30 : f32
    %59 = vector.broadcast %cst_20 : f32 to vector<64x24xf32>
    %60 = arith.select %58, %43, %59 : vector<64x24xi1>, vector<64x24xf32>
    %cst_21 = arith.constant dense<0xFF800000> : vector<64xf32>
    %61 = vector.multi_reduction <maximumf>, %60, %cst_21 [1] : vector<64x24xf32> to vector<64xf32>
    %62 = vector.shape_cast %61 : vector<64xf32> to vector<64x1xf32>
    %63 = vector.broadcast %62 : vector<64x1xf32> to vector<64x24xf32>
    %64 = arith.subf %60, %63 : vector<64x24xf32>
    %65 = math.exp %64 : vector<64x24xf32>
    %cst_22 = arith.constant dense<0.000000e+00> : vector<64xf32>
    %66 = vector.multi_reduction <add>, %65, %cst_22 [1] : vector<64x24xf32> to vector<64xf32>
    %67 = vector.shape_cast %66 : vector<64xf32> to vector<64x1xf32>
    %68 = tpu.reciprocal %67 {approx = true} : vector<64x1xf32> -> vector<64x1xf32>
    %69 = vector.broadcast %68 : vector<64x1xf32> to vector<64x24xf32>
    %70 = arith.mulf %65, %69 : vector<64x24xf32>
    %71 = arith.truncf %70 : vector<64x24xf32> to vector<64x24xbf16>
    %72 = arith.truncf %38 : vector<24x16xf32> to vector<24x16xbf16>
    %cst_23 = arith.constant dense<0.000000e+00> : vector<64x16xf32>
    %73 = tpu.matmul %71, %72, %cst_23 {dimension_numbers = #tpu.dot_dimension_numbers<[1], [0], [0], [1], [0, 0, 1, 1], [], []>} : vector<64x24xbf16>, vector<24x16xbf16>, vector<64x16xf32> -> vector<64x16xf32>
    %74 = vector.extract_strided_slice %73 {offsets = [0, 0], sizes = [16, 16], strides = [1, 1]} : vector<64x16xf32> to vector<16x16xf32>
    %75 = vector.extract_strided_slice %73 {offsets = [16, 0], sizes = [16, 16], strides = [1, 1]} : vector<64x16xf32> to vector<16x16xf32>
    %76 = vector.extract_strided_slice %73 {offsets = [32, 0], sizes = [16, 16], strides = [1, 1]} : vector<64x16xf32> to vector<16x16xf32>
    %77 = vector.extract_strided_slice %73 {offsets = [48, 0], sizes = [16, 16], strides = [1, 1]} : vector<64x16xf32> to vector<16x16xf32>
    %78 = tpu.concatenate %74, %75, %76, %77 in 1 : vector<16x16xf32>, vector<16x16xf32>, vector<16x16xf32>, vector<16x16xf32> -> vector<16x64xf32>
    %79 = arith.truncf %78 : vector<16x64xf32> to vector<16x64xbf16>
    %c0_24 = arith.constant 0 : index
    %c0_25 = arith.constant 0 : index
    %80 = vector.load %arg5[%c0_24, %c0_25] : memref<64x32xbf16, #tpu.memory_space<vmem>>, vector<64x32xbf16>
    %cst_26 = arith.constant dense<0.000000e+00> : vector<16x32xf32>
    %81 = tpu.matmul %79, %80, %cst_26 {dimension_numbers = #tpu.dot_dimension_numbers<[1], [0], [0], [1], [0, 0, 1, 1], [], []>} : vector<16x64xbf16>, vector<64x32xbf16>, vector<16x32xf32> -> vector<16x32xf32>
    %c0_27 = arith.constant 0 : index
    %c0_28 = arith.constant 0 : index
    %82 = vector.load %arg8[%c0_27, %c0_28] : memref<1x32xf32, #tpu.memory_space<vmem>>, vector<1x32xf32>
    %c0_29 = arith.constant 0 : index
    %c0_30 = arith.constant 0 : index
    %83 = vector.load %arg9[%c0_29, %c0_30] : memref<1x32xf32, #tpu.memory_space<vmem>>, vector<1x32xf32>
    %cst_31 = arith.constant dense<0.000000e+00> : vector<16xf32>
    %84 = vector.multi_reduction <add>, %81, %cst_31 [1] : vector<16x32xf32> to vector<16xf32>
    %85 = vector.shape_cast %84 : vector<16xf32> to vector<16x1xf32>
    %cst_32 = arith.constant 3.200000e+01 : f32
    %86 = vector.broadcast %cst_32 : f32 to vector<16x1xf32>
    %87 = arith.divf %85, %86 : vector<16x1xf32>
    %88 = vector.broadcast %87 : vector<16x1xf32> to vector<16x32xf32>
    %89 = arith.subf %81, %88 : vector<16x32xf32>
    %90 = arith.mulf %89, %89 : vector<16x32xf32>
    %cst_33 = arith.constant dense<0.000000e+00> : vector<16xf32>
    %91 = vector.multi_reduction <add>, %90, %cst_33 [1] : vector<16x32xf32> to vector<16xf32>
    %92 = vector.shape_cast %91 : vector<16xf32> to vector<16x1xf32>
    %cst_34 = arith.constant 3.200000e+01 : f32
    %93 = vector.broadcast %cst_34 : f32 to vector<16x1xf32>
    %94 = arith.divf %92, %93 : vector<16x1xf32>
    %95 = vector.broadcast %87 : vector<16x1xf32> to vector<16x32xf32>
    %96 = arith.subf %81, %95 : vector<16x32xf32>
    %cst_35 = arith.constant 9.99999974E-6 : f32
    %97 = vector.broadcast %cst_35 : f32 to vector<16x1xf32>
    %98 = arith.addf %94, %97 : vector<16x1xf32>
    %99 = math.rsqrt %98 : vector<16x1xf32>
    %100 = vector.broadcast %99 : vector<16x1xf32> to vector<16x32xf32>
    %101 = arith.mulf %96, %100 : vector<16x32xf32>
    %102 = vector.broadcast %82 : vector<1x32xf32> to vector<16x32xf32>
    %103 = arith.mulf %101, %102 : vector<16x32xf32>
    %104 = vector.broadcast %83 : vector<1x32xf32> to vector<16x32xf32>
    %105 = arith.addf %103, %104 : vector<16x32xf32>
    %c0_36 = arith.constant 0 : index
    %c0_37 = arith.constant 0 : index
    %106 = vector.load %arg10[%c0_36, %c0_37] : memref<16x32xf32, #tpu.memory_space<vmem>>, vector<16x32xf32>
    tpu.vector_store %arg10[%c0_36, %c0_37], %105 {strides = array<i32>} : memref<16x32xf32, #tpu.memory_space<vmem>>, vector<16x32xf32>,
    return
  }
  func.func @transform_0(%arg0: i32) -> (i32, i32) {
    %c0_i32 = arith.constant 0 : i32
    %c0_i32_0 = arith.constant 0 : i32
    %c0_i32_1 = arith.constant 0 : i32
    return %c0_i32, %c0_i32_0 : i32, i32
  }
  func.func @transform_1(%arg0: i32) -> (i32, i32) {
    %c0_i32 = arith.constant 0 : i32
    %c0_i32_0 = arith.constant 0 : i32
    %c0_i32_1 = arith.constant 0 : i32
    return %c0_i32, %c0_i32_0 : i32, i32
  }
  func.func @transform_2(%arg0: i32) -> (i32, i32) {
    %c0_i32 = arith.constant 0 : i32
    %c0_i32_0 = arith.constant 0 : i32
    %c0_i32_1 = arith.constant 0 : i32
    return %c0_i32, %c0_i32_0 : i32, i32
  }
  func.func @transform_3(%arg0: i32) -> (i32, i32) {
    %c0_i32 = arith.constant 0 : i32
    %c0_i32_0 = arith.constant 0 : i32
    %c0_i32_1 = arith.constant 0 : i32
    return %c0_i32, %c0_i32_0 : i32, i32
  }
  func.func @transform_4(%arg0: i32) -> (i32, i32) {
    %c0_i32 = arith.constant 0 : i32
    %c0_i32_0 = arith.constant 0 : i32
    %c0_i32_1 = arith.constant 0 : i32
    return %c0_i32, %c0_i32_0 : i32, i32
  }
  func.func @transform_5(%arg0: i32) -> (i32, i32) {
    %c0_i32 = arith.constant 0 : i32
    %c0_i32_0 = arith.constant 0 : i32
    %c0_i32_1 = arith.constant 0 : i32
    return %c0_i32, %c0_i32_0 : i32, i32
  }
  func.func @transform_6(%arg0: i32) -> (i32, i32) {
    %c0_i32 = arith.constant 0 : i32
    %c0_i32_0 = arith.constant 0 : i32
    %c0_i32_1 = arith.constant 0 : i32
    return %c0_i32, %c0_i32_0 : i32, i32
  }
  func.func @transform_7(%arg0: i32) -> (i32, i32) {
    %c0_i32 = arith.constant 0 : i32
    %c0_i32_0 = arith.constant 0 : i32
    %c0_i32_1 = arith.constant 0 : i32
    return %c0_i32, %c0_i32_0 : i32, i32
  }
  func.func @transform_8(%arg0: i32) -> (i32, i32) {
    %c0_i32 = arith.constant 0 : i32
    %c0_i32_0 = arith.constant 0 : i32
    %c0_i32_1 = arith.constant 0 : i32
    return %c0_i32, %c0_i32_0 : i32, i32
  }
  func.func @transform_9(%arg0: i32) -> (i32, i32) {
    %c0_i32 = arith.constant 0 : i32
    %c0_i32_0 = arith.constant 0 : i32
    %c0_i32_1 = arith.constant 0 : i32
    return %c0_i32, %c0_i32_0 : i32, i32
  }
}

</mosaic_0001>

<llo_original>
// kernel: attention_types_normal.1
$region0: #{attention_types_normal.1}
  #allocation0 [shape = 'u32[]', space=smem, size = 0x4, offset = 0x4, fixed_abs, tag = 'smem constant byte address 0x4 - core index']
  #allocation1 [shape = 'u32[144,128]{1,0:T(1,128)}', space=vmem, size = 0x12000, scoped, tag = 'internal scratch']
  %s0 = inlined_call_operand.vmem [shape: f32[16,32], index: 0, kind: input, shape index: {}]
  %s1 = inlined_call_operand.vmem [shape: bf16[32,96], index: 1, kind: input, shape index: {}]
  %s2 = inlined_call_operand.vmem [shape: f32[8,16], index: 2, kind: input, shape index: {}]
  %s3 = inlined_call_operand.vmem [shape: f32[8,16], index: 3, kind: input, shape index: {}]
  %s4 = inlined_call_operand.vmem [shape: bf16[64,32], index: 4, kind: input, shape index: {}]
  %s5 = inlined_call_operand.vmem [shape: f32[1,32], index: 5, kind: input, shape index: {}]
  %s6 = inlined_call_operand.vmem [shape: f32[1,32], index: 6, kind: input, shape index: {}]
  %s7 = inlined_call_operand.vmem [shape: f32[1,32], index: 7, kind: input, shape index: {}]
  %s8 = inlined_call_operand.vmem [shape: f32[1,32], index: 8, kind: input, shape index: {}]
  %s9 = inlined_call_operand.hbm [shape: f32[16,32], index: 9, kind: output, shape index: {}]
  %s10 = sld [smem:[#allocation0]]
  $region46: #{attention_types_normal.1} parent=0
    _
  %s12 = ssub.s32 1, %s10
  %s13 = scalar_select 0, %s12, %s10
  $region1: #{attention_types_normal.1} parent=0
    #allocation2 [shape = 'u8[8192]{0}', space=vmem, size = 0x2000, scoped, tag = 'output window, operand 0, single buffered']
    #allocation3 [shape = 's32[1]{0}', space=sflag, size = 0x4, scoped, tag = 'scoped memory for attention_types_normal.1']
    %14 = vsyncpa [#allocation3], 0
    // Predicated region
    $region2: #{attention_types_normal.1} parent=1 // pred_check
      _
    $region3: #{attention_types_normal.1} parent=1 // pred_check_branch
      %16 = sbr.rel (0) target = $region5
    $region4: #{attention_types_normal.1} parent=1 // pred_region
      _
    $region5: #{attention_types_normal.1} parent=1 // pred_fallthru
      _
    // Predicated region
    $region6: #{attention_types_normal.1} parent=1 // pred_check
      _
    $region7: #{attention_types_normal.1} parent=1 // pred_check_branch
      %18 = sbr.rel (0) target = $region9
    $region8: #{attention_types_normal.1} parent=1 // pred_region
      _
    $region9: #{attention_types_normal.1} parent=1 // pred_fallthru
      _
    // Predicated region
    $region10: #{attention_types_normal.1} parent=1 // pred_check
      _
    $region11: #{attention_types_normal.1} parent=1 // pred_check_branch
      %20 = sbr.rel (0) target = $region13
    $region12: #{attention_types_normal.1} parent=1 // pred_region
      _
    $region13: #{attention_types_normal.1} parent=1 // pred_fallthru
      _
    // Predicated region
    $region14: #{attention_types_normal.1} parent=1 // pred_check
      _
    $region15: #{attention_types_normal.1} parent=1 // pred_check_branch
      %22 = sbr.rel (0) target = $region17
    $region16: #{attention_types_normal.1} parent=1 // pred_region
      _
    $region17: #{attention_types_normal.1} parent=1 // pred_fallthru
      _
    // Predicated region
    $region18: #{attention_types_normal.1} parent=1 // pred_check
      _
    $region19: #{attention_types_normal.1} parent=1 // pred_check_branch
      %24 = sbr.rel (0) target = $region21
    $region20: #{attention_types_normal.1} parent=1 // pred_region
      _
    $region21: #{attention_types_normal.1} parent=1 // pred_fallthru
      _
    // Predicated region
    $region22: #{attention_types_normal.1} parent=1 // pred_check
      _
    $region23: #{attention_types_normal.1} parent=1 // pred_check_branch
      %26 = sbr.rel (0) target = $region25
    $region24: #{attention_types_normal.1} parent=1 // pred_region
      _
    $region25: #{attention_types_normal.1} parent=1 // pred_fallthru
      _
    // Predicated region
    $region26: #{attention_types_normal.1} parent=1 // pred_check
      _
    $region27: #{attention_types_normal.1} parent=1 // pred_check_branch
      %28 = sbr.rel (0) target = $region29
    $region28: #{attention_types_normal.1} parent=1 // pred_region
      _
    $region29: #{attention_types_normal.1} parent=1 // pred_fallthru
      _
    // Predicated region
    $region30: #{attention_types_normal.1} parent=1 // pred_check
      _
    $region31: #{attention_types_normal.1} parent=1 // pred_check_branch
      %30 = sbr.rel (0) target = $region33
    $region32: #{attention_types_normal.1} parent=1 // pred_region
      _
    $region33: #{attention_types_normal.1} parent=1 // pred_fallthru
      _
    // Predicated region
    $region34: #{attention_types_normal.1} parent=1 // pred_check
      _
    $region35: #{attention_types_normal.1} parent=1 // pred_check_branch
      %32 = sbr.rel (0) target = $region37
    $region36: #{attention_types_normal.1} parent=1 // pred_region
      _
    $region37: #{attention_types_normal.1} parent=1 // pred_fallthru
      _
    %v34 = vld [vmem:[%s0] sm:$0xff]
    %v35 = vld [vmem:[%s0 + $0x8] sm:$0xff]
    %v36 = vld [vmem:[%s5] sm:$0x1]
    %v37 = vld [vmem:[%s6] sm:$0x1]
    %vm38 = vcmask 261120
    %v39 = vsel %vm38, %v34, 0.0
    %40 = vadd.xlane.f32.xlu0 %v39
    %v41 = vpop.xlane.xlu0 %40
    %v42 = vsel %vm38, %v35, 0.0
    %43 = vadd.xlane.f32.xlu0 %v42
    %v44 = vpop.xlane.xlu0 %43
    %v45 = vrcp.pop 32.0
    %v46 = vmul.f32 %v41, %v45
    %v47 = vmul.f32 %v44, %v45
    %v48 = vsub.f32 %v34, %v46
    %v49 = vsub.f32 %v35, %v47
    %v50 = vmul.f32 %v48, %v48
    %v51 = vmul.f32 %v49, %v49
    %v52 = vsel %vm38, %v50, 0.0
    %53 = vadd.xlane.f32.xlu0 %v52
    %v54 = vpop.xlane.xlu0 %53
    %v55 = vsel %vm38, %v51, 0.0
    %56 = vadd.xlane.f32.xlu0 %v55
    %v57 = vpop.xlane.xlu0 %56
    %v58 = vmul.f32 %v54, %v45
    %v59 = vmul.f32 %v57, %v45
    %v60 = vadd.f32 %v58, 1e-05
    %v61 = vadd.f32 %v59, 1e-05
    %v62 = vrsqrt.pop %v60
    %v63 = vrsqrt.pop %v61
    %v64 = vmul.f32 %v48, %v62
    %v65 = vmul.f32 %v49, %v63
    %v67 = vlaneseq
    %v68 = vshrl.u32 %v67, 7
    %v69 = vsub.s32 0, %v68
    %v70 = vrot.slane %v36, %v69
    %v72 = vmul.f32 %v64, %v70
    %v73 = vmul.f32 %v65, %v70
    %v75 = vlaneseq
    %v76 = vshrl.u32 %v75, 7
    %v77 = vsub.s32 0, %v76
    %v78 = vrot.slane %v37, %v77
    %v80 = vadd.f32 %v72, %v78
    %v81 = vadd.f32 %v73, %v78
    %v82 = vpack.c.bf16 %v81, %v80
    %v83 = vld [vmem:[%s1] sm:$0xf]
    %v84 = vld [vmem:[%s1 + $0x4] sm:$0xf]
    %v85 = vld [vmem:[%s1 + $0x8] sm:$0xf]
    %v86 = vld [vmem:[%s1 + $0xc] sm:$0xf]
    %v91 = vunpack.c.l.b16 %v83
    %v92 = vunpack.c.l.b16 %v84
    %v93 = vunpack.c.l.b16 %v85
    %v94 = vunpack.c.l.b16 %v86
    %v95 = vpack.c.b16 %v92, %v91
    %v96 = vpack.c.b16 %v94, %v93
    %v100 = vsel %vm38, %v82, 0
    %102 = vmatprep.subr.bf16.mxu0 0
    %103 = vmatpush1.bf16.msra.mxu0 %v95
    %104 = vmatprep.subr.bf16.mxu0 0
    %105 = vmatpush1.bf16.msra.mxu0 %v96
    %106 = vmatprep.subr.bf16.mxu0 0
    %107 = vmatpush1.bf16.msra.mxu0 0
    %108 = vmatprep.subr.bf16.mxu0 0
    %109 = vmatpush1.bf16.msra.mxu0 0
    %110 = vmatprep.subr.bf16.mxu0 0
    %111 = vmatpush1.bf16.msra.mxu0 0
    %112 = vmatprep.subr.bf16.mxu0 0
    %113 = vmatpush1.bf16.msra.mxu0 0
    %114 = vmatprep.subr.bf16.mxu0 0
    %115 = vmatpush1.bf16.msra.mxu0 0
    %116 = vmatprep.subr.bf16.mxu0 0
    %117 = vmatpush1.bf16.msra.mxu0 0
    %118 = vmatprep.subr.bf16.mxu0 0
    %119 = vmatpush1.bf16.msra.mxu0 0
    %120 = vmatprep.subr.bf16.mxu0 0
    %121 = vmatpush1.bf16.msra.mxu0 0
    %122 = vmatprep.subr.bf16.mxu0 0
    %123 = vmatpush1.bf16.msra.mxu0 0
    %124 = vmatprep.subr.bf16.mxu0 0
    %125 = vmatpush1.bf16.msra.mxu0 0
    %126 = vmatprep.subr.bf16.mxu0 0
    %127 = vmatpush1.bf16.msra.mxu0 0
    %128 = vmatprep.subr.bf16.mxu0 0
    %129 = vmatpush1.bf16.msra.mxu0 0
    %130 = vmatprep.subr.bf16.mxu0 0
    %131 = vmatpush1.bf16.msra.mxu0 0
    %132 = vmatprep.subr.bf16.mxu0 0
    %133 = vmatpush1.bf16.msra.mxu0 0
    %134 = vmatprep.mubr.bf16.mxu0 0
    %135 = vmatmul.mubr.bf16.gmra.mrb[0].mxu0 %v100
    %v136 = vpop.f32.mrb[0].mxu0
    %v137 = vadd.f32 0.0, %v136
    %v138 = vpop.f32.mrb[0].mxu0
    %v139 = vpop.f32.mrb[0].mxu0
    %v140 = vadd.f32 0.0, %v139
    %v141 = vpop.f32.mrb[0].mxu0
    %142 = vdwg.mxu0
    %145 = vrot.lane.b32.xlu0 %v137, 112
    %v146 = vpop.permute.xlu0 %145
    %147 = vrot.lane.b32.xlu0 %v140, 112
    %v148 = vpop.permute.xlu0 %147
    %151 = vrot.lane.b32.xlu0 %v137, 96
    %v152 = vpop.permute.xlu0 %151
    %153 = vrot.lane.b32.xlu0 %v140, 96
    %v154 = vpop.permute.xlu0 %153
    %157 = vrot.lane.b32.xlu0 %v137, 80
    %v158 = vpop.permute.xlu0 %157
    %159 = vrot.lane.b32.xlu0 %v140, 80
    %v160 = vpop.permute.xlu0 %159
    %v163 = vld [vmem:[%s2] sm:$0xff]
    %165 = vrot.lane.b32.xlu0 %v163, 64
    %v166 = vpop.permute.xlu0 %165
    %v168 = vld [vmem:[%s3] sm:$0xff]
    %170 = vrot.lane.b32.xlu0 %v168, 80
    %v171 = vpop.permute.xlu0 %170
    %v173 = vpack.c.bf16 %v140, %v137
    %v174 = vpack.c.bf16 %v148, %v146
    %v175 = vpack.c.bf16 %v154, %v152
    %v176 = vpack.c.bf16 %v160, %v158
    %v177 = vpack.c.bf16 %v166, %v166
    %180 = vrot.lane.b32.xlu0 %v173, 64
    %v181 = vpop.permute.xlu0 %180
    %182 = vrot.lane.b32.xlu0 %v177, 64
    %v183 = vpop.permute.xlu0 %182
    %vm184 = vcmask 130048
    %v186 = vsel %vm184, %v173, 0
    %v189 = vsel %vm184, %v174, 0
    %v192 = vsel %vm184, %v175, 0
    %v195 = vsel %vm184, %v176, 0
    %v198 = vsel %vm184, %v181, 0
    %v201 = vsel %vm184, %v183, 0
    %203 = vmatprep.subr.bf16.mxu0 0
    %204 = vmatpush1.bf16.xpose.msra.mxu0 %v198
    %205 = vmatprep.subr.bf16.mxu0 0
    %206 = vmatpush1.bf16.xpose.msra.mxu0 %v201
    %207 = vmatprep.subr.bf16.mxu0 0
    %208 = vmatpush1.bf16.xpose.msra.mxu0 0
    %209 = vmatprep.subr.bf16.mxu0 0
    %210 = vmatpush1.bf16.xpose.msra.mxu0 0
    %211 = vmatprep.subr.bf16.mxu0 0
    %212 = vmatpush1.bf16.xpose.msra.mxu0 0
    %213 = vmatprep.subr.bf16.mxu0 0
    %214 = vmatpush1.bf16.xpose.msra.mxu0 0
    %215 = vmatprep.subr.bf16.mxu0 0
    %216 = vmatpush1.bf16.xpose.msra.mxu0 0
    %217 = vmatprep.subr.bf16.mxu0 0
    %218 = vmatpush1.bf16.xpose.msra.mxu0 0
    %219 = vmatprep.subr.bf16.mxu0 0
    %220 = vmatpush1.bf16.xpose.msra.mxu0 0
    %221 = vmatprep.subr.bf16.mxu0 0
    %222 = vmatpush1.bf16.xpose.msra.mxu0 0
    %223 = vmatprep.subr.bf16.mxu0 0
    %224 = vmatpush1.bf16.xpose.msra.mxu0 0
    %225 = vmatprep.subr.bf16.mxu0 0
    %226 = vmatpush1.bf16.xpose.msra.mxu0 0
    %227 = vmatprep.subr.bf16.mxu0 0
    %228 = vmatpush1.bf16.xpose.msra.mxu0 0
    %229 = vmatprep.subr.bf16.mxu0 0
    %230 = vmatpush1.bf16.xpose.msra.mxu0 0
    %231 = vmatprep.subr.bf16.mxu0 0
    %232 = vmatpush1.bf16.xpose.msra.mxu0 0
    %233 = vmatprep.subr.bf16.mxu0 0
    %234 = vmatpush1.bf16.xpose.msra.mxu0 0
    %235 = vmatprep.mubr.bf16.mxu0 0
    %236 = vmatmul.mubr.bf16.gmra.mrb[0].mxu0 %v186
    %v237 = vpop.f32.mrb[0].mxu0
    %v238 = vadd.f32 0.0, %v237
    %v239 = vpop.f32.mrb[0].mxu0
    %v240 = vpop.f32.mrb[0].mxu0
    %v241 = vadd.f32 0.0, %v240
    %v242 = vpop.f32.mrb[0].mxu0
    %243 = vmatprep.mubr.bf16.mxu0 0
    %244 = vmatmul.mubr.bf16.gmra.mrb[0].mxu0 %v189
    %v245 = vpop.f32.mrb[0].mxu0
    %v246 = vadd.f32 0.0, %v245
    %v247 = vpop.f32.mrb[0].mxu0
    %v248 = vpop.f32.mrb[0].mxu0
    %v249 = vadd.f32 0.0, %v248
    %v250 = vpop.f32.mrb[0].mxu0
    %251 = vmatprep.mubr.bf16.mxu0 0
    %252 = vmatmul.mubr.bf16.gmra.mrb[0].mxu0 %v192
    %v253 = vpop.f32.mrb[0].mxu0
    %v254 = vadd.f32 0.0, %v253
    %v255 = vpop.f32.mrb[0].mxu0
    %v256 = vpop.f32.mrb[0].mxu0
    %v257 = vadd.f32 0.0, %v256
    %v258 = vpop.f32.mrb[0].mxu0
    %259 = vmatprep.mubr.bf16.mxu0 0
    %260 = vmatmul.mubr.bf16.gmra.mrb[0].mxu0 %v195
    %v261 = vpop.f32.mrb[0].mxu0
    %v262 = vadd.f32 0.0, %v261
    %v263 = vpop.f32.mrb[0].mxu0
    %v264 = vpop.f32.mrb[0].mxu0
    %v265 = vadd.f32 0.0, %v264
    %v266 = vpop.f32.mrb[0].mxu0
    %267 = vdwg.mxu0
    %v268 = vmul.f32 %v238, 0.25
    %v269 = vmul.f32 %v241, 0.25
    %v270 = vmul.f32 %v246, 0.25
    %v271 = vmul.f32 %v249, 0.25
    %v272 = vmul.f32 %v254, 0.25
    %v273 = vmul.f32 %v257, 0.25
    %v274 = vmul.f32 %v262, 0.25
    %v275 = vmul.f32 %v265, 0.25
    %v276 = vlaneseq
    %v277 = vshrl.u32 %v276, 7
    %v278 = vadd.s32 %v277, 8
    %v279 = vadd.s32 %v277, 16
    %v280 = vadd.s32 %v277, 24
    %v281 = vadd.s32 %v277, 32
    %v282 = vadd.s32 %v277, 40
    %v283 = vadd.s32 %v277, 48
    %v284 = vadd.s32 %v277, 56
    %v285 = vlaneseq
    %v286 = vand.u32 %v285, 127
    %v287 = vshra.s32 %v277, 3
    %v288 = vshra.s32 %v278, 3
    %v289 = vshra.s32 %v279, 3
    %v290 = vshra.s32 %v280, 3
    %v291 = vshra.s32 %v281, 3
    %v292 = vshra.s32 %v282, 3
    %v293 = vshra.s32 %v283, 3
    %v294 = vshra.s32 %v284, 3
    %v295 = vand.u32 %v287, 1
    %v296 = vand.u32 %v288, 1
    %v297 = vand.u32 %v289, 1
    %v298 = vand.u32 %v290, 1
    %v299 = vand.u32 %v291, 1
    %v300 = vand.u32 %v292, 1
    %v301 = vand.u32 %v293, 1
    %v302 = vand.u32 %v294, 1
    %v303 = vshra.s32 %v286, 3
    %vm304 = vcmp.eq.s32.totalorder %v286, 16
    %vm305 = vcmp.lt.s32.totalorder %v286, 16
    %vm306 = vcmp.eq.s32.totalorder %v303, %v295
    %vm307 = vcmp.eq.s32.totalorder %v303, %v296
    %vm308 = vcmp.eq.s32.totalorder %v303, %v297
    %vm309 = vcmp.eq.s32.totalorder %v303, %v298
    %vm310 = vcmp.eq.s32.totalorder %v303, %v299
    %vm311 = vcmp.eq.s32.totalorder %v303, %v300
    %vm312 = vcmp.eq.s32.totalorder %v303, %v301
    %vm313 = vcmp.eq.s32.totalorder %v303, %v302
    %vm314 = vmand %vm305, %vm306
    %vm315 = vmand %vm305, %vm307
    %vm316 = vmand %vm305, %vm308
    %vm317 = vmand %vm305, %vm309
    %vm318 = vmand %vm305, %vm310
    %vm319 = vmand %vm305, %vm311
    %vm320 = vmand %vm305, %vm312
    %vm321 = vmand %vm305, %vm313
    %vm322 = vmor %vm304, %vm314
    %vm323 = vmor %vm304, %vm315
    %vm324 = vmor %vm304, %vm316
    %vm325 = vmor %vm304, %vm317
    %vm326 = vmor %vm304, %vm318
    %vm327 = vmor %vm304, %vm319
    %vm328 = vmor %vm304, %vm320
    %vm329 = vmor %vm304, %vm321
    %v330 = vsel %vm322, %v268, -1e+30
    %v331 = vsel %vm323, %v269, -1e+30
    %v332 = vsel %vm324, %v270, -1e+30
    %v333 = vsel %vm325, %v271, -1e+30
    %v334 = vsel %vm326, %v272, -1e+30
    %v335 = vsel %vm327, %v273, -1e+30
    %v336 = vsel %vm328, %v274, -1e+30
    %v337 = vsel %vm329, %v275, -1e+30
    %vm338 = vcmask 195584
    %v339 = vsel %vm338, %v330, -inf
    %340 = vmax.xlane.f32.xlu0 %v339
    %v341 = vpop.xlane.xlu0 %340
    %v342 = vsel %vm338, %v331, -inf
    %343 = vmax.xlane.f32.xlu0 %v342
    %v344 = vpop.xlane.xlu0 %343
    %v345 = vsel %vm338, %v332, -inf
    %346 = vmax.xlane.f32.xlu0 %v345
    %v347 = vpop.xlane.xlu0 %346
    %v348 = vsel %vm338, %v333, -inf
    %349 = vmax.xlane.f32.xlu0 %v348
    %v350 = vpop.xlane.xlu0 %349
    %v351 = vsel %vm338, %v334, -inf
    %352 = vmax.xlane.f32.xlu0 %v351
    %v353 = vpop.xlane.xlu0 %352
    %v354 = vsel %vm338, %v335, -inf
    %355 = vmax.xlane.f32.xlu0 %v354
    %v356 = vpop.xlane.xlu0 %355
    %v357 = vsel %vm338, %v336, -inf
    %358 = vmax.xlane.f32.xlu0 %v357
    %v359 = vpop.xlane.xlu0 %358
    %v360 = vsel %vm338, %v337, -inf
    %361 = vmax.xlane.f32.xlu0 %v360
    %v362 = vpop.xlane.xlu0 %361
    %v363 = vsub.f32 %v330, %v341
    %v364 = vsub.f32 %v331, %v344
    %v365 = vsub.f32 %v332, %v347
    %v366 = vsub.f32 %v333, %v350
    %v367 = vsub.f32 %v334, %v353
    %v368 = vsub.f32 %v335, %v356
    %v369 = vsub.f32 %v336, %v359
    %v370 = vsub.f32 %v337, %v362
    %v371 = vmul.f32 %v363, 1.442695
    %v372 = vpow.pop %v371
    %v373 = vmul.f32 %v364, 1.442695
    %v374 = vpow.pop %v373
    %v375 = vmul.f32 %v365, 1.442695
    %v376 = vpow.pop %v375
    %v377 = vmul.f32 %v366, 1.442695
    %v378 = vpow.pop %v377
    %v379 = vmul.f32 %v367, 1.442695
    %v380 = vpow.pop %v379
    %v381 = vmul.f32 %v368, 1.442695
    %v382 = vpow.pop %v381
    %v383 = vmul.f32 %v369, 1.442695
    %v384 = vpow.pop %v383
    %v385 = vmul.f32 %v370, 1.442695
    %v386 = vpow.pop %v385
    %v387 = vsel %vm338, %v372, 0.0
    %388 = vadd.xlane.f32.xlu0 %v387
    %v389 = vpop.xlane.xlu0 %388
    %v390 = vsel %vm338, %v374, 0.0
    %391 = vadd.xlane.f32.xlu0 %v390
    %v392 = vpop.xlane.xlu0 %391
    %v393 = vsel %vm338, %v376, 0.0
    %394 = vadd.xlane.f32.xlu0 %v393
    %v395 = vpop.xlane.xlu0 %394
    %v396 = vsel %vm338, %v378, 0.0
    %397 = vadd.xlane.f32.xlu0 %v396
    %v398 = vpop.xlane.xlu0 %397
    %v399 = vsel %vm338, %v380, 0.0
    %400 = vadd.xlane.f32.xlu0 %v399
    %v401 = vpop.xlane.xlu0 %400
    %v402 = vsel %vm338, %v382, 0.0
    %403 = vadd.xlane.f32.xlu0 %v402
    %v404 = vpop.xlane.xlu0 %403
    %v405 = vsel %vm338, %v384, 0.0
    %406 = vadd.xlane.f32.xlu0 %v405
    %v407 = vpop.xlane.xlu0 %406
    %v408 = vsel %vm338, %v386, 0.0
    %409 = vadd.xlane.f32.xlu0 %v408
    %v410 = vpop.xlane.xlu0 %409
    %v411 = vrcp.pop %v389
    %v412 = vrcp.pop %v392
    %v413 = vrcp.pop %v395
    %v414 = vrcp.pop %v398
    %v415 = vrcp.pop %v401
    %v416 = vrcp.pop %v404
    %v417 = vrcp.pop %v407
    %v418 = vrcp.pop %v410
    %v419 = vmul.f32 %v372, %v411
    %v420 = vmul.f32 %v374, %v412
    %v421 = vmul.f32 %v376, %v413
    %v422 = vmul.f32 %v378, %v414
    %v423 = vmul.f32 %v380, %v415
    %v424 = vmul.f32 %v382, %v416
    %v425 = vmul.f32 %v384, %v417
    %v426 = vmul.f32 %v386, %v418
    %v427 = vpack.c.bf16 %v420, %v419
    %v428 = vpack.c.bf16 %v422, %v421
    %v429 = vpack.c.bf16 %v424, %v423
    %v430 = vpack.c.bf16 %v426, %v425
    %v431 = vpack.c.bf16 %v171, %v171
    %433 = vrot.lane.b32.xlu0 %v173, 48
    %v434 = vpop.permute.xlu0 %433
    %435 = vrot.lane.b32.xlu0 %v431, 48
    %v436 = vpop.permute.xlu0 %435
    %v439 = vsel %vm338, %v427, 0
    %v442 = vsel %vm338, %v428, 0
    %v445 = vsel %vm338, %v429, 0
    %v448 = vsel %vm338, %v430, 0
    %vm450 = vcmask 1043456
    %v452 = vsel %vm450, %v436, 0
    %454 = vmatprep.subr.bf16.mxu0 0
    %455 = vmatpush1.bf16.msra.mxu0 %v434
    %456 = vmatprep.subr.bf16.mxu0 0
    %457 = vmatpush1.bf16.msra.mxu0 %v452
    %458 = vmatprep.subr.bf16.mxu0 0
    %459 = vmatpush1.bf16.msra.mxu0 0
    %460 = vmatprep.subr.bf16.mxu0 0
    %461 = vmatpush1.bf16.msra.mxu0 0
    %462 = vmatprep.subr.bf16.mxu0 0
    %463 = vmatpush1.bf16.msra.mxu0 0
    %464 = vmatprep.subr.bf16.mxu0 0
    %465 = vmatpush1.bf16.msra.mxu0 0
    %466 = vmatprep.subr.bf16.mxu0 0
    %467 = vmatpush1.bf16.msra.mxu0 0
    %468 = vmatprep.subr.bf16.mxu0 0
    %469 = vmatpush1.bf16.msra.mxu0 0
    %470 = vmatprep.subr.bf16.mxu0 0
    %471 = vmatpush1.bf16.msra.mxu0 0
    %472 = vmatprep.subr.bf16.mxu0 0
    %473 = vmatpush1.bf16.msra.mxu0 0
    %474 = vmatprep.subr.bf16.mxu0 0
    %475 = vmatpush1.bf16.msra.mxu0 0
    %476 = vmatprep.subr.bf16.mxu0 0
    %477 = vmatpush1.bf16.msra.mxu0 0
    %478 = vmatprep.subr.bf16.mxu0 0
    %479 = vmatpush1.bf16.msra.mxu0 0
    %480 = vmatprep.subr.bf16.mxu0 0
    %481 = vmatpush1.bf16.msra.mxu0 0
    %482 = vmatprep.subr.bf16.mxu0 0
    %483 = vmatpush1.bf16.msra.mxu0 0
    %484 = vmatprep.subr.bf16.mxu0 0
    %485 = vmatpush1.bf16.msra.mxu0 0
    %486 = vmatprep.mubr.bf16.mxu0 0
    %487 = vmatmul.mubr.bf16.gmra.mrb[0].mxu0 %v439
    %v488 = vpop.f32.mrb[0].mxu0
    %v489 = vadd.f32 0.0, %v488
    %v490 = vpop.f32.mrb[0].mxu0
    %v491 = vpop.f32.mrb[0].mxu0
    %v492 = vadd.f32 0.0, %v491
    %v493 = vpop.f32.mrb[0].mxu0
    %494 = vmatprep.mubr.bf16.mxu0 0
    %495 = vmatmul.mubr.bf16.gmra.mrb[0].mxu0 %v442
    %v496 = vpop.f32.mrb[0].mxu0
    %v497 = vadd.f32 0.0, %v496
    %v498 = vpop.f32.mrb[0].mxu0
    %v499 = vpop.f32.mrb[0].mxu0
    %v500 = vadd.f32 0.0, %v499
    %v501 = vpop.f32.mrb[0].mxu0
    %502 = vmatprep.mubr.bf16.mxu0 0
    %503 = vmatmul.mubr.bf16.gmra.mrb[0].mxu0 %v445
    %v504 = vpop.f32.mrb[0].mxu0
    %v505 = vadd.f32 0.0, %v504
    %v506 = vpop.f32.mrb[0].mxu0
    %v507 = vpop.f32.mrb[0].mxu0
    %v508 = vadd.f32 0.0, %v507
    %v509 = vpop.f32.mrb[0].mxu0
    %510 = vmatprep.mubr.bf16.mxu0 0
    %511 = vmatmul.mubr.bf16.gmra.mrb[0].mxu0 %v448
    %v512 = vpop.f32.mrb[0].mxu0
    %v513 = vadd.f32 0.0, %v512
    %v514 = vpop.f32.mrb[0].mxu0
    %v515 = vpop.f32.mrb[0].mxu0
    %v516 = vadd.f32 0.0, %v515
    %v517 = vpop.f32.mrb[0].mxu0
    %518 = vdwg.mxu0
    %521 = vrot.lane.b32.xlu0 %v497, 16
    %v522 = vpop.permute.xlu0 %521
    %523 = vrot.lane.b32.xlu0 %v500, 16
    %v524 = vpop.permute.xlu0 %523
    %529 = vrot.lane.b32.xlu0 %v505, 32
    %v530 = vpop.permute.xlu0 %529
    %531 = vrot.lane.b32.xlu0 %v508, 32
    %v532 = vpop.permute.xlu0 %531
    %537 = vrot.lane.b32.xlu0 %v513, 48
    %v538 = vpop.permute.xlu0 %537
    %539 = vrot.lane.b32.xlu0 %v516, 48
    %v540 = vpop.permute.xlu0 %539
    %v543 = vsel %vm184, %v489, %v522
    %v544 = vsel %vm184, %v492, %v524
    %v545 = vsel %vm38, %v543, %v530
    %v546 = vsel %vm38, %v544, %v532
    %vm547 = vcmask 392192
    %v548 = vsel %vm547, %v545, %v538
    %v549 = vsel %vm547, %v546, %v540
    %v550 = vpack.c.bf16 %v549, %v548
    %v551 = vld [vmem:[%s4] sm:$0xf]
    %v552 = vld [vmem:[%s4 + $0x4] sm:$0xf]
    %v553 = vld [vmem:[%s4 + $0x8] sm:$0xf]
    %v554 = vld [vmem:[%s4 + $0xc] sm:$0xf]
    %v555 = vld [vmem:[%s4 + $0x10] sm:$0xf]
    %v556 = vld [vmem:[%s4 + $0x14] sm:$0xf]
    %v557 = vld [vmem:[%s4 + $0x18] sm:$0xf]
    %v558 = vld [vmem:[%s4 + $0x1c] sm:$0xf]
    %v567 = vunpack.c.l.b16 %v551
    %v568 = vunpack.c.l.b16 %v552
    %v569 = vunpack.c.l.b16 %v553
    %v570 = vunpack.c.l.b16 %v554
    %v571 = vunpack.c.l.b16 %v555
    %v572 = vunpack.c.l.b16 %v556
    %v573 = vunpack.c.l.b16 %v557
    %v574 = vunpack.c.l.b16 %v558
    %v575 = vpack.c.b16 %v568, %v567
    %v576 = vpack.c.b16 %v570, %v569
    %v577 = vpack.c.b16 %v572, %v571
    %v578 = vpack.c.b16 %v574, %v573
    %vm583 = vcmask 523264
    %v585 = vsel %vm583, %v550, 0
    %587 = vmatprep.subr.bf16.mxu0 0
    %588 = vmatpush1.bf16.msra.mxu0 %v575
    %589 = vmatprep.subr.bf16.mxu0 0
    %590 = vmatpush1.bf16.msra.mxu0 %v576
    %591 = vmatprep.subr.bf16.mxu0 0
    %592 = vmatpush1.bf16.msra.mxu0 %v577
    %593 = vmatprep.subr.bf16.mxu0 0
    %594 = vmatpush1.bf16.msra.mxu0 %v578
    %595 = vmatprep.subr.bf16.mxu0 0
    %596 = vmatpush1.bf16.msra.mxu0 0
    %597 = vmatprep.subr.bf16.mxu0 0
    %598 = vmatpush1.bf16.msra.mxu0 0
    %599 = vmatprep.subr.bf16.mxu0 0
    %600 = vmatpush1.bf16.msra.mxu0 0
    %601 = vmatprep.subr.bf16.mxu0 0
    %602 = vmatpush1.bf16.msra.mxu0 0
    %603 = vmatprep.subr.bf16.mxu0 0
    %604 = vmatpush1.bf16.msra.mxu0 0
    %605 = vmatprep.subr.bf16.mxu0 0
    %606 = vmatpush1.bf16.msra.mxu0 0
    %607 = vmatprep.subr.bf16.mxu0 0
    %608 = vmatpush1.bf16.msra.mxu0 0
    %609 = vmatprep.subr.bf16.mxu0 0
    %610 = vmatpush1.bf16.msra.mxu0 0
    %611 = vmatprep.subr.bf16.mxu0 0
    %612 = vmatpush1.bf16.msra.mxu0 0
    %613 = vmatprep.subr.bf16.mxu0 0
    %614 = vmatpush1.bf16.msra.mxu0 0
    %615 = vmatprep.subr.bf16.mxu0 0
    %616 = vmatpush1.bf16.msra.mxu0 0
    %617 = vmatprep.subr.bf16.mxu0 0
    %618 = vmatpush1.bf16.msra.mxu0 0
    %619 = vmatprep.mubr.bf16.mxu0 0
    %620 = vmatmul.mubr.bf16.gmra.mrb[0].mxu0 %v585
    %v621 = vpop.f32.mrb[0].mxu0
    %v622 = vadd.f32 0.0, %v621
    %v623 = vpop.f32.mrb[0].mxu0
    %v624 = vpop.f32.mrb[0].mxu0
    %v625 = vadd.f32 0.0, %v624
    %v626 = vpop.f32.mrb[0].mxu0
    %627 = vdwg.mxu0
    %v628 = vld [vmem:[%s7] sm:$0x1]
    %v629 = vld [vmem:[%s8] sm:$0x1]
    %v630 = vsel %vm38, %v622, 0.0
    %631 = vadd.xlane.f32.xlu0 %v630
    %v632 = vpop.xlane.xlu0 %631
    %v633 = vsel %vm38, %v625, 0.0
    %634 = vadd.xlane.f32.xlu0 %v633
    %v635 = vpop.xlane.xlu0 %634
    %v636 = vmul.f32 %v632, %v45
    %v637 = vmul.f32 %v635, %v45
    %v638 = vsub.f32 %v622, %v636
    %v639 = vsub.f32 %v625, %v637
    %v640 = vmul.f32 %v638, %v638
    %v641 = vmul.f32 %v639, %v639
    %v642 = vsel %vm38, %v640, 0.0
    %643 = vadd.xlane.f32.xlu0 %v642
    %v644 = vpop.xlane.xlu0 %643
    %v645 = vsel %vm38, %v641, 0.0
    %646 = vadd.xlane.f32.xlu0 %v645
    %v647 = vpop.xlane.xlu0 %646
    %v648 = vmul.f32 %v644, %v45
    %v649 = vmul.f32 %v647, %v45
    %v650 = vadd.f32 %v648, 1e-05
    %v651 = vadd.f32 %v649, 1e-05
    %v652 = vrsqrt.pop %v650
    %v653 = vrsqrt.pop %v651
    %v654 = vmul.f32 %v638, %v652
    %v655 = vmul.f32 %v639, %v653
    %v657 = vlaneseq
    %v658 = vshrl.u32 %v657, 7
    %v659 = vsub.s32 0, %v658
    %v660 = vrot.slane %v628, %v659
    %v662 = vmul.f32 %v654, %v660
    %v663 = vmul.f32 %v655, %v660
    %v665 = vlaneseq
    %v666 = vshrl.u32 %v665, 7
    %v667 = vsub.s32 0, %v666
    %v668 = vrot.slane %v629, %v667
    %v670 = vadd.f32 %v662, %v668
    %v671 = vadd.f32 %v663, %v668
    %672 = vst.msk [vmem:[#allocation2] sm:$0xff] %vm38, %v670
    %673 = vst.msk [vmem:[#allocation2 + $0x8] sm:$0xff] %vm38, %v671
    // Predicated region
    $region38: #{attention_types_normal.1} parent=1 // pred_check
      _
    $region39: #{attention_types_normal.1} parent=1 // pred_check_branch
      %675 = sbr.rel (0) target = $region41
    $region40: #{attention_types_normal.1} parent=1 // pred_region
      %s677 = ssub.s32 256, 256
      %678 = vsyncadd [#allocation3], %s677
      %s679 = sshll.u32 [#allocation2], 4
      %s680 = int_to_ptr.vmem [resolvable:$true] %s679
      %685 = dma.vmem_to_hbm [thread:$0]  %s680, 256, %s9, [#allocation3], 128, 128, 8
    $region41: #{attention_types_normal.1} parent=1 // pred_fallthru
      _
    // Predicated region
    $region42: #{attention_types_normal.1} parent=1 // pred_check
      _
    $region43: #{attention_types_normal.1} parent=1 // pred_check_branch
      %687 = sbr.rel (0) target = $region45
    $region44: #{attention_types_normal.1} parent=1 // pred_region
      %688 = dma.done [#allocation3], 256
    $region45: #{attention_types_normal.1} parent=1 // pred_fallthru
      _
    %689 = vsyncpa [#allocation3], 1

</llo_original>
